<compile_context>
chip_gen: v5e
topology: v5e:2x2
jax: 0.10.0
libtpu: 0.0.40
codegen_flags: <defaults>
</compile_context>

<pallas_src>
import jax
import jax.numpy as jnp
from jax.experimental import pallas as pl
from jax.experimental.pallas import tpu as pltpu


def xmnet_head_kernel(w_att_ref, feat_ref, w_cls_ref, b_cls_ref,
                      out_ref, pooled_ref):
    # feat_ref block: [Bt, C, HW]  (native NCHW; spatial on lanes, channels on
    # sublanes -> no wrapper-side transpose pass through HBM).
    f = feat_ref[...].astype(jnp.float32)                   # [Bt, C, HW]
    hw = f.shape[2]

    # channel-wise statistics (reduce over channel axis = sublanes)
    mean_c = jnp.mean(f, axis=1, keepdims=True)             # [Bt, 1, HW]
    max_c = jnp.max(f, axis=1, keepdims=True)               # [Bt, 1, HW]

    # 1x1 conv over the 2 stacked channels == w0*mean + w1*max (no bias)
    w0 = w_att_ref[0]
    w1 = w_att_ref[1]
    att = jax.nn.sigmoid(w0 * mean_c + w1 * max_c)          # [Bt, 1, HW]

    # getAttFeats + adaptive_avg_pool2d fused:
    #   mean_hw(0.5*f + 0.5*att*f) = (0.5/HW) * sum_hw((1 + att) * f)
    pooled = (0.5 / hw) * jnp.sum((1.0 + att) * f, axis=2)  # [Bt, C]
    pooled_ref[...] = pooled.astype(pooled_ref.dtype)

    # classifier: Linear(C -> num_classes), weight pre-transposed to [C, ncp]
    out = jnp.dot(pooled, w_cls_ref[...],
                  preferred_element_type=jnp.float32) + b_cls_ref[...]
    out_ref[...] = out.astype(out_ref.dtype)


def _pick_block_batch(B, C, HW, itemsize):
    """Batch items per grid step: big enough to amortize per-step overhead,
    small enough that a double-buffered input block fits comfortably in VMEM
    (sized on the *padded* in-VMEM footprint), a multiple of 8, and >= 2 grid
    steps for large batches (v7x megacore)."""
    hw_pad = max(128, -(-HW // 128) * 128)       # lane dim pads to 128
    c_pad = -(-C // 8) * 8                       # sublane dim pads to 8
    per_item = max(1, c_pad * hw_pad * itemsize)
    cap = (6 * 1024 * 1024) // per_item          # ~6 MiB per in-flight buffer
    cap = max(8, (int(cap) // 8) * 8)
    if B < 16:
        return B                                  # single step; block == full dim
    half = -(-B // 2)                             # ceil(B/2): keep grid >= 2
    return max(8, min(cap, -(-half // 8) * 8))


def xmnet_forward(feat_nchw, w_att, w_cls, b_cls):
    """feat_nchw: [B, C, H, W] backbone output. Returns (outputs_dict, get_that)."""
    B, C, H, W = feat_nchw.shape
    HW = H * W
    num_classes = w_cls.shape[0]
    ncp = max(128, -(-num_classes // 128) * 128)          # lane-dense 'out'

    # free reshape (contiguous NCHW), no transpose pass; keep input dtype
    feat = feat_nchw.reshape(B, C, HW)

    Bt = _pick_block_batch(B, C, HW, feat.dtype.itemsize)
    B_pad = -(-B // Bt) * Bt
    if B_pad != B:
        feat = jnp.pad(feat, ((0, B_pad - B), (0, 0), (0, 0)))

    w_att_flat = w_att.reshape(2).astype(jnp.float32)     # (1,2,1,1) -> (2,)
    w_cls_t = jnp.zeros((C, ncp), jnp.float32).at[:, :num_classes].set(
        w_cls.astype(jnp.float32).T)                      # pre-transposed + padded
    b_cls_p = jnp.zeros((1, ncp), jnp.float32).at[:, :num_classes].set(
        b_cls.astype(jnp.float32))

    cost = pl.CostEstimate(
        flops=5 * B_pad * HW * C + 2 * B_pad * C * ncp,
        transcendentals=B_pad * HW,
        bytes_accessed=(feat.size * feat.dtype.itemsize
                        + w_cls_t.size * 4 + b_cls_p.size * 4
                        + B_pad * (ncp + C) * 4),
    )

    out, pooled = pl.pallas_call(
        xmnet_head_kernel,
        out_shape=(
            jax.ShapeDtypeStruct((B_pad, ncp), jnp.float32),  # outputs['out'] (padded)
            jax.ShapeDtypeStruct((B_pad, C), jnp.float32),    # get_that
        ),
        grid=(B_pad // Bt,),
        in_specs=[
            # attention 1x1 conv weights: 2 scalars in SMEM
            pl.BlockSpec(memory_space=pltpu.MemorySpace.SMEM),
            # Bt batch items per step, full channel/spatial extent (NCHW)
            pl.BlockSpec((Bt, C, HW), lambda i: (i, 0, 0)),
            # classifier weight [C, ncp] (resident, same block every step)
            pl.BlockSpec((C, ncp), lambda i: (0, 0)),
            # classifier bias [1, ncp]
            pl.BlockSpec((1, ncp), lambda i: (0, 0)),
        ],
        out_specs=(
            pl.BlockSpec((Bt, ncp), lambda i: (i, 0)),
            pl.BlockSpec((Bt, C), lambda i: (i, 0)),
        ),
        compiler_params=pltpu.CompilerParams(
            dimension_semantics=("parallel",),
            vmem_limit_bytes=32 * 1024 * 1024),
        cost_estimate=cost,
    )(w_att_flat, feat, w_cls_t, b_cls_p)

    outputs = {"out": out[:B, :num_classes]}
    return outputs, pooled[:B]


def xmnet_forward_ref(feat_nchw, w_att, w_cls, b_cls):
    """Pure-JAX reference mirroring the PyTorch forward (resnet path)."""
    f = feat_nchw.astype(jnp.float32)
    w = w_att.reshape(2).astype(jnp.float32)
    mean_c = jnp.mean(f, axis=1, keepdims=True)
    max_c = jnp.max(f, axis=1, keepdims=True)
    att = jax.nn.sigmoid(w[0] * mean_c + w[1] * max_c)
    f = 0.5 * f + 0.5 * (att * f)
    pooled = jnp.mean(f, axis=(2, 3))
    out = pooled @ w_cls.astype(jnp.float32).T + b_cls.astype(jnp.float32)
    return out, pooled


def _run_case(key, B, C, H, W, num_classes):
    k_feat, k_att, k_w, k_b = jax.random.split(key, 4)
    feat = jax.random.normal(k_feat, (B, C, H, W), dtype=jnp.float32)
    # nn.Conv2d(2, 1, kernel_size=1, bias=False) -> weight (1, 2, 1, 1)
    w_att = jax.random.normal(k_att, (1, 2, 1, 1), dtype=jnp.float32) * 0.5
    # nn.Linear(C, num_classes)
    w_cls = jax.random.normal(k_w, (num_classes, C), dtype=jnp.float32) * 0.1
    b_cls = jax.random.normal(k_b, (num_classes,), dtype=jnp.float32) * 0.1

    outputs, get_that = xmnet_forward(feat, w_att, w_cls, b_cls)
    jax.block_until_ready((outputs["out"], get_that))

    out_ref, pooled_ref = xmnet_forward_ref(feat, w_att, w_cls, b_cls)
    assert outputs["out"].shape == out_ref.shape
    assert get_that.shape == pooled_ref.shape
    assert jnp.allclose(outputs["out"], out_ref, rtol=1e-4, atol=1e-4), "out mismatch"
    assert jnp.allclose(get_that, pooled_ref, rtol=1e-4, atol=1e-4), "pooled mismatch"


if __name__ == "__main__":
    key = jax.random.PRNGKey(0)
    k1, k2 = jax.random.split(key)
    # small shapes consistent with the module's head:
    #   backbone feature map [B, C, H, W], classifier Linear(C, num_classes)
    _run_case(k1, B=4, C=128, H=8, W=8, num_classes=10)      # single-step grid
    _run_case(k2, B=20, C=64, H=7, W=7, num_classes=8)       # multi-step + padding
    print("KERNEL_OK")
</pallas_src>

<mosaic_0001>
module attributes {stable_mosaic.version = 11 : i64} {
  func.func @xmnet_head_kernel(%arg0: i32, %arg1: memref<2xf32, #tpu.memory_space<smem>>, %arg2: memref<4x128x64xf32, #tpu.memory_space<vmem>>, %arg3: memref<128x128xf32, #tpu.memory_space<vmem>>, %arg4: memref<1x128xf32, #tpu.memory_space<vmem>>, %arg5: memref<4x128xf32, #tpu.memory_space<vmem>>, %arg6: memref<4x128xf32, #tpu.memory_space<vmem>>) attributes {dimension_semantics = [#tpu.dimension_semantics<parallel>], iteration_bounds = array<i64: 1>, scalar_prefetch = 0 : i64, scratch_operands = 0 : i64, tpu.core_type = #tpu.core_type<tc>, window_params = [{transform_indices = @transform_0, window_bounds = array<i64: 2>}, {transform_indices = @transform_1, window_bounds = array<i64: 4, 128, 64>}, {pipeline_mode = #tpu.pipeline_mode<synchronous>, transform_indices = @transform_2, window_bounds = array<i64: 128, 128>}, {pipeline_mode = #tpu.pipeline_mode<synchronous>, transform_indices = @transform_3, window_bounds = array<i64: 1, 128>}, {transform_indices = @transform_4, window_bounds = array<i64: 4, 128>}, {transform_indices = @transform_5, window_bounds = array<i64: 4, 128>}]} {
    %c0 = arith.constant 0 : index
    %c0_0 = arith.constant 0 : index
    %c0_1 = arith.constant 0 : index
    %0 = vector.load %arg2[%c0, %c0_0, %c0_1] : memref<4x128x64xf32, #tpu.memory_space<vmem>>, vector<4x128x64xf32>
    %cst = arith.constant dense<0.000000e+00> : vector<4x64xf32>
    %1 = vector.multi_reduction <add>, %0, %cst [1] : vector<4x128x64xf32> to vector<4x64xf32>
    %2 = vector.shape_cast %1 : vector<4x64xf32> to vector<4x1x64xf32>
    %cst_2 = arith.constant 1.280000e+02 : f32
    %3 = vector.broadcast %cst_2 : f32 to vector<4x1x64xf32>
    %4 = arith.divf %2, %3 : vector<4x1x64xf32>
    %cst_3 = arith.constant dense<0xFF800000> : vector<4x64xf32>
    %5 = vector.multi_reduction <maximumf>, %0, %cst_3 [1] : vector<4x128x64xf32> to vector<4x64xf32>
    %6 = vector.shape_cast %5 : vector<4x64xf32> to vector<4x1x64xf32>
    %c0_4 = arith.constant 0 : index
    %7 = memref.load %arg1[%c0_4] : memref<2xf32, #tpu.memory_space<smem>>
    %c1 = arith.constant 1 : index
    %8 = memref.load %arg1[%c1] : memref<2xf32, #tpu.memory_space<smem>>
    %9 = vector.broadcast %7 : f32 to vector<4x1x64xf32>
    %10 = arith.mulf %9, %4 : vector<4x1x64xf32>
    %11 = vector.broadcast %8 : f32 to vector<4x1x64xf32>
    %12 = arith.mulf %11, %6 : vector<4x1x64xf32>
    %13 = arith.addf %10, %12 : vector<4x1x64xf32>
    %14 = arith.negf %13 : vector<4x1x64xf32>
    %15 = math.exp %14 : vector<4x1x64xf32>
    %cst_5 = arith.constant 1.000000e+00 : f32
    %16 = vector.broadcast %cst_5 : f32 to vector<4x1x64xf32>
    %17 = arith.addf %16, %15 : vector<4x1x64xf32>
    %18 = arith.divf %16, %17 : vector<4x1x64xf32>
    %cst_6 = arith.constant 1.000000e+00 : f32
    %19 = vector.broadcast %cst_6 : f32 to vector<4x1x64xf32>
    %20 = arith.addf %19, %18 : vector<4x1x64xf32>
    %21 = vector.broadcast %20 : vector<4x1x64xf32> to vector<4x128x64xf32>
    %22 = arith.mulf %21, %0 : vector<4x128x64xf32>
    %cst_7 = arith.constant dense<0.000000e+00> : vector<4x128xf32>
    %23 = vector.multi_reduction <add>, %22, %cst_7 [2] : vector<4x128x64xf32> to vector<4x128xf32>
    %cst_8 = arith.constant 7.812500e-03 : f32
    %24 = vector.broadcast %cst_8 : f32 to vector<4x128xf32>
    %25 = arith.mulf %24, %23 : vector<4x128xf32>
    %c0_9 = arith.constant 0 : index
    %c0_10 = arith.constant 0 : index
    %26 = vector.load %arg6[%c0_9, %c0_10] : memref<4x128xf32, #tpu.memory_space<vmem>>, vector<4x128xf32>
    tpu.vector_store %arg6[%c0_9, %c0_10], %25 {strides = array<i32>} : memref<4x128xf32, #tpu.memory_space<vmem>>, vector<4x128xf32>,
    %c0_11 = arith.constant 0 : index
    %c0_12 = arith.constant 0 : index
    %27 = vector.load %arg3[%c0_11, %c0_12] : memref<128x128xf32, #tpu.memory_space<vmem>>, vector<128x128xf32>
    %cst_13 = arith.constant dense<0.000000e+00> : vector<4x128xf32>
    %28 = tpu.matmul %25, %27, %cst_13 {dimension_numbers = #tpu.dot_dimension_numbers<[1], [0], [0], [1], [0, 0, 1, 1], [], []>} : vector<4x128xf32>, vector<128x128xf32>, vector<4x128xf32> -> vector<4x128xf32>
    %c0_14 = arith.constant 0 : index
    %c0_15 = arith.constant 0 : index
    %29 = vector.load %arg4[%c0_14, %c0_15] : memref<1x128xf32, #tpu.memory_space<vmem>>, vector<1x128xf32>
    %30 = vector.broadcast %29 : vector<1x128xf32> to vector<4x128xf32>
    %31 = arith.addf %28, %30 : vector<4x128xf32>
    %c0_16 = arith.constant 0 : index
    %c0_17 = arith.constant 0 : index
    %32 = vector.load %arg5[%c0_16, %c0_17] : memref<4x128xf32, #tpu.memory_space<vmem>>, vector<4x128xf32>
    tpu.vector_store %arg5[%c0_16, %c0_17], %31 {strides = array<i32>} : memref<4x128xf32, #tpu.memory_space<vmem>>, vector<4x128xf32>,
    return
  }
  func.func @transform_0(%arg0: i32) -> i32 {
    %c0_i32 = arith.constant 0 : i32
    %c0_i32_0 = arith.constant 0 : i32
    return %c0_i32 : i32
  }
  func.func @transform_1(%arg0: i32) -> (i32, i32, i32) {
    %c0_i32 = arith.constant 0 : i32
    %c0_i32_0 = arith.constant 0 : i32
    %c0_i32_1 = arith.constant 0 : i32
    return %arg0, %c0_i32, %c0_i32_0 : i32, i32, i32
  }
  func.func @transform_2(%arg0: i32) -> (i32, i32) {
    %c0_i32 = arith.constant 0 : i32
    %c0_i32_0 = arith.constant 0 : i32
    %c0_i32_1 = arith.constant 0 : i32
    return %c0_i32, %c0_i32_0 : i32, i32
  }
  func.func @transform_3(%arg0: i32) -> (i32, i32) {
    %c0_i32 = arith.constant 0 : i32
    %c0_i32_0 = arith.constant 0 : i32
    %c0_i32_1 = arith.constant 0 : i32
    return %c0_i32, %c0_i32_0 : i32, i32
  }
  func.func @transform_4(%arg0: i32) -> (i32, i32) {
    %c0_i32 = arith.constant 0 : i32
    %c0_i32_0 = arith.constant 0 : i32
    return %arg0, %c0_i32 : i32, i32
  }
  func.func @transform_5(%arg0: i32) -> (i32, i32) {
    %c0_i32 = arith.constant 0 : i32
    %c0_i32_0 = arith.constant 0 : i32
    return %arg0, %c0_i32 : i32, i32
  }
}

</mosaic_0001>

<llo_original>
// kernel: tpu_custom_call.1
$region0: #{tpu_custom_call.1}
  #allocation0 [shape = 'u32[]', space=smem, size = 0x4, offset = 0x4, fixed_abs, tag = 'smem constant byte address 0x4 - core index']
  #allocation1 [shape = 'u32[72,128]{1,0:T(1,128)}', space=vmem, size = 0x9000, scoped, tag = 'internal scratch']
  %s0 = inlined_call_operand.vmem [shape: f32[2], index: 0, kind: input, shape index: {}]
  %s1 = inlined_call_operand.vmem [shape: f32[4,128,64], index: 1, kind: input, shape index: {}]
  %s2 = inlined_call_operand.vmem [shape: f32[128,128], index: 2, kind: input, shape index: {}]
  %s3 = inlined_call_operand.vmem [shape: f32[1,128], index: 3, kind: input, shape index: {}]
  %s4 = inlined_call_operand.hbm [shape: f32[4,128], index: 4, kind: output, shape index: {0}]
  %s5 = inlined_call_operand.hbm [shape: f32[4,128], index: 5, kind: output, shape index: {1}]
  %6 = xla_tuple %s4, %s5
  %s7 = sld [smem:[#allocation0]]
  $region38: #{tpu_custom_call.1} parent=0
    _
  %s9 = ssub.s32 1, %s7
  %s10 = scalar_select 0, %s9, %s7
  $region1: #{tpu_custom_call.1} parent=0
    #allocation2 [shape = 'u8[512]{0}', space=smem, size = 0x200, scoped, tag = 'input window, operand 0, single buffered']
    #allocation3 [shape = 's32[1]{0}', space=sflag, size = 0x4, scoped, tag = 'scoped memory for tpu_custom_call.1']
    #allocation4 [shape = 's32[1]{0}', space=sflag, size = 0x4, scoped, tag = 'scoped memory for tpu_custom_call.1']
    #allocation5 [shape = 'u8[2048]{0}', space=vmem, size = 0x800, scoped, tag = 'output window, operand 0, single buffered']
    #allocation6 [shape = 'u8[2048]{0}', space=vmem, size = 0x800, scoped, tag = 'output window, operand 1, single buffered']
    #allocation7 [shape = 's32[1]{0}', space=sflag, size = 0x4, scoped, tag = 'scoped memory for tpu_custom_call.1']
    %11 = vsyncpa [#allocation4], 0
    %12 = vsyncpa [#allocation3], 0
    %13 = vsyncpa [#allocation7], 0
    // Predicated region
    $region2: #{tpu_custom_call.1} parent=1 // pred_check
      _
    $region3: #{tpu_custom_call.1} parent=1 // pred_check_branch
      %15 = sbr.rel (0) target = $region5
    $region4: #{tpu_custom_call.1} parent=1 // pred_region
      %17 = vsyncadd [#allocation4], 0
      %s19 = sshll.u32 %s0, 4
      %s20 = int_to_ptr.vmem [resolvable:$true] %s19
      %22 = dma.vmem_to_smem %s20, 16, [#allocation2], [#allocation4]
    $region5: #{tpu_custom_call.1} parent=1 // pred_fallthru
      _
    // Predicated region
    $region6: #{tpu_custom_call.1} parent=1 // pred_check
      _
    $region7: #{tpu_custom_call.1} parent=1 // pred_check_branch
      %24 = sbr.rel (0) target = $region9
    $region8: #{tpu_custom_call.1} parent=1 // pred_region
      _
    $region9: #{tpu_custom_call.1} parent=1 // pred_fallthru
      _
    // Predicated region
    $region10: #{tpu_custom_call.1} parent=1 // pred_check
      _
    $region11: #{tpu_custom_call.1} parent=1 // pred_check_branch
      %26 = sbr.rel (0) target = $region13
    $region12: #{tpu_custom_call.1} parent=1 // pred_region
      _
    $region13: #{tpu_custom_call.1} parent=1 // pred_fallthru
      _
    // Predicated region
    $region14: #{tpu_custom_call.1} parent=1 // pred_check
      _
    $region15: #{tpu_custom_call.1} parent=1 // pred_check_branch
      %28 = sbr.rel (0) target = $region17
    $region16: #{tpu_custom_call.1} parent=1 // pred_region
      _
    $region17: #{tpu_custom_call.1} parent=1 // pred_fallthru
      _
    // Predicated region
    $region18: #{tpu_custom_call.1} parent=1 // pred_check
      _
    $region19: #{tpu_custom_call.1} parent=1 // pred_check_branch
      %30 = sbr.rel (0) target = $region21
    $region20: #{tpu_custom_call.1} parent=1 // pred_region
      %32 = dma.done [#allocation4], 16
    $region21: #{tpu_custom_call.1} parent=1 // pred_fallthru
      _
    %33 = sfence
    %v34 = vld [vmem:[%s1] sm:$0xff]
    %v35 = vld [vmem:[%s1 + $0x8] sm:$0xff]
    %v36 = vld [vmem:[%s1 + $0x10] sm:$0xff]
    %v37 = vld [vmem:[%s1 + $0x18] sm:$0xff]
    %v38 = vld [vmem:[%s1 + $0x20] sm:$0xff]
    %v39 = vld [vmem:[%s1 + $0x28] sm:$0xff]
    %v40 = vld [vmem:[%s1 + $0x30] sm:$0xff]
    %v41 = vld [vmem:[%s1 + $0x38] sm:$0xff]
    %v42 = vld [vmem:[%s1 + $0x40] sm:$0xff]
    %v43 = vld [vmem:[%s1 + $0x48] sm:$0xff]
    %v44 = vld [vmem:[%s1 + $0x50] sm:$0xff]
    %v45 = vld [vmem:[%s1 + $0x58] sm:$0xff]
    %v46 = vld [vmem:[%s1 + $0x60] sm:$0xff]
    %v47 = vld [vmem:[%s1 + $0x68] sm:$0xff]
    %v48 = vld [vmem:[%s1 + $0x70] sm:$0xff]
    %v49 = vld [vmem:[%s1 + $0x78] sm:$0xff]
    %v50 = vld [vmem:[%s1 + $0x80] sm:$0xff]
    %v51 = vld [vmem:[%s1 + $0x88] sm:$0xff]
    %v52 = vld [vmem:[%s1 + $0x90] sm:$0xff]
    %v53 = vld [vmem:[%s1 + $0x98] sm:$0xff]
    %v54 = vld [vmem:[%s1 + $0xa0] sm:$0xff]
    %v55 = vld [vmem:[%s1 + $0xa8] sm:$0xff]
    %v56 = vld [vmem:[%s1 + $0xb0] sm:$0xff]
    %v57 = vld [vmem:[%s1 + $0xb8] sm:$0xff]
    %v58 = vld [vmem:[%s1 + $0xc0] sm:$0xff]
    %v59 = vld [vmem:[%s1 + $0xc8] sm:$0xff]
    %v60 = vld [vmem:[%s1 + $0xd0] sm:$0xff]
    %v61 = vld [vmem:[%s1 + $0xd8] sm:$0xff]
    %v62 = vld [vmem:[%s1 + $0xe0] sm:$0xff]
    %v63 = vld [vmem:[%s1 + $0xe8] sm:$0xff]
    %v64 = vld [vmem:[%s1 + $0xf0] sm:$0xff]
    %v65 = vld [vmem:[%s1 + $0xf8] sm:$0xff]
    %v66 = vld [vmem:[%s1 + $0x100] sm:$0xff]
    %v67 = vld [vmem:[%s1 + $0x108] sm:$0xff]
    %v68 = vld [vmem:[%s1 + $0x110] sm:$0xff]
    %v69 = vld [vmem:[%s1 + $0x118] sm:$0xff]
    %v70 = vld [vmem:[%s1 + $0x120] sm:$0xff]
    %v71 = vld [vmem:[%s1 + $0x128] sm:$0xff]
    %v72 = vld [vmem:[%s1 + $0x130] sm:$0xff]
    %v73 = vld [vmem:[%s1 + $0x138] sm:$0xff]
    %v74 = vld [vmem:[%s1 + $0x140] sm:$0xff]
    %v75 = vld [vmem:[%s1 + $0x148] sm:$0xff]
    %v76 = vld [vmem:[%s1 + $0x150] sm:$0xff]
    %v77 = vld [vmem:[%s1 + $0x158] sm:$0xff]
    %v78 = vld [vmem:[%s1 + $0x160] sm:$0xff]
    %v79 = vld [vmem:[%s1 + $0x168] sm:$0xff]
    %v80 = vld [vmem:[%s1 + $0x170] sm:$0xff]
    %v81 = vld [vmem:[%s1 + $0x178] sm:$0xff]
    %v82 = vld [vmem:[%s1 + $0x180] sm:$0xff]
    %v83 = vld [vmem:[%s1 + $0x188] sm:$0xff]
    %v84 = vld [vmem:[%s1 + $0x190] sm:$0xff]
    %v85 = vld [vmem:[%s1 + $0x198] sm:$0xff]
    %v86 = vld [vmem:[%s1 + $0x1a0] sm:$0xff]
    %v87 = vld [vmem:[%s1 + $0x1a8] sm:$0xff]
    %v88 = vld [vmem:[%s1 + $0x1b0] sm:$0xff]
    %v89 = vld [vmem:[%s1 + $0x1b8] sm:$0xff]
    %v90 = vld [vmem:[%s1 + $0x1c0] sm:$0xff]
    %v91 = vld [vmem:[%s1 + $0x1c8] sm:$0xff]
    %v92 = vld [vmem:[%s1 + $0x1d0] sm:$0xff]
    %v93 = vld [vmem:[%s1 + $0x1d8] sm:$0xff]
    %v94 = vld [vmem:[%s1 + $0x1e0] sm:$0xff]
    %v95 = vld [vmem:[%s1 + $0x1e8] sm:$0xff]
    %v96 = vld [vmem:[%s1 + $0x1f0] sm:$0xff]
    %v97 = vld [vmem:[%s1 + $0x1f8] sm:$0xff]
    %vm98 = vcmask 523264
    %v99 = vsel %vm98, %v34, 0.0
    %v100 = vsel %vm98, %v35, 0.0
    %v101 = vadd.f32 %v99, %v100
    %v102 = vsel %vm98, %v36, 0.0
    %v103 = vadd.f32 %v101, %v102
    %v104 = vsel %vm98, %v37, 0.0
    %v105 = vadd.f32 %v103, %v104
    %v106 = vsel %vm98, %v38, 0.0
    %v107 = vadd.f32 %v105, %v106
    %v108 = vsel %vm98, %v39, 0.0
    %v109 = vadd.f32 %v107, %v108
    %v110 = vsel %vm98, %v40, 0.0
    %v111 = vadd.f32 %v109, %v110
    %v112 = vsel %vm98, %v41, 0.0
    %v113 = vadd.f32 %v111, %v112
    %v114 = vsel %vm98, %v42, 0.0
    %v115 = vadd.f32 %v113, %v114
    %v116 = vsel %vm98, %v43, 0.0
    %v117 = vadd.f32 %v115, %v116
    %v118 = vsel %vm98, %v44, 0.0
    %v119 = vadd.f32 %v117, %v118
    %v120 = vsel %vm98, %v45, 0.0
    %v121 = vadd.f32 %v119, %v120
    %v122 = vsel %vm98, %v46, 0.0
    %v123 = vadd.f32 %v121, %v122
    %v124 = vsel %vm98, %v47, 0.0
    %v125 = vadd.f32 %v123, %v124
    %v126 = vsel %vm98, %v48, 0.0
    %v127 = vadd.f32 %v125, %v126
    %v128 = vsel %vm98, %v49, 0.0
    %v129 = vadd.f32 %v127, %v128
    %v130 = vrot.slane %v129, 4
    %v131 = vadd.f32 %v129, %v130
    %v132 = vrot.slane %v131, 2
    %v133 = vadd.f32 %v131, %v132
    %v134 = vrot.slane %v133, 1
    %v135 = vadd.f32 %v133, %v134
    %v136 = vsel %vm98, %v50, 0.0
    %v137 = vsel %vm98, %v51, 0.0
    %v138 = vadd.f32 %v136, %v137
    %v139 = vsel %vm98, %v52, 0.0
    %v140 = vadd.f32 %v138, %v139
    %v141 = vsel %vm98, %v53, 0.0
    %v142 = vadd.f32 %v140, %v141
    %v143 = vsel %vm98, %v54, 0.0
    %v144 = vadd.f32 %v142, %v143
    %v145 = vsel %vm98, %v55, 0.0
    %v146 = vadd.f32 %v144, %v145
    %v147 = vsel %vm98, %v56, 0.0
    %v148 = vadd.f32 %v146, %v147
    %v149 = vsel %vm98, %v57, 0.0
    %v150 = vadd.f32 %v148, %v149
    %v151 = vsel %vm98, %v58, 0.0
    %v152 = vadd.f32 %v150, %v151
    %v153 = vsel %vm98, %v59, 0.0
    %v154 = vadd.f32 %v152, %v153
    %v155 = vsel %vm98, %v60, 0.0
    %v156 = vadd.f32 %v154, %v155
    %v157 = vsel %vm98, %v61, 0.0
    %v158 = vadd.f32 %v156, %v157
    %v159 = vsel %vm98, %v62, 0.0
    %v160 = vadd.f32 %v158, %v159
    %v161 = vsel %vm98, %v63, 0.0
    %v162 = vadd.f32 %v160, %v161
    %v163 = vsel %vm98, %v64, 0.0
    %v164 = vadd.f32 %v162, %v163
    %v165 = vsel %vm98, %v65, 0.0
    %v166 = vadd.f32 %v164, %v165
    %v167 = vrot.slane %v166, 4
    %v168 = vadd.f32 %v166, %v167
    %v169 = vrot.slane %v168, 2
    %v170 = vadd.f32 %v168, %v169
    %v171 = vrot.slane %v170, 1
    %v172 = vadd.f32 %v170, %v171
    %v173 = vsel %vm98, %v66, 0.0
    %v174 = vsel %vm98, %v67, 0.0
    %v175 = vadd.f32 %v173, %v174
    %v176 = vsel %vm98, %v68, 0.0
    %v177 = vadd.f32 %v175, %v176
    %v178 = vsel %vm98, %v69, 0.0
    %v179 = vadd.f32 %v177, %v178
    %v180 = vsel %vm98, %v70, 0.0
    %v181 = vadd.f32 %v179, %v180
    %v182 = vsel %vm98, %v71, 0.0
    %v183 = vadd.f32 %v181, %v182
    %v184 = vsel %vm98, %v72, 0.0
    %v185 = vadd.f32 %v183, %v184
    %v186 = vsel %vm98, %v73, 0.0
    %v187 = vadd.f32 %v185, %v186
    %v188 = vsel %vm98, %v74, 0.0
    %v189 = vadd.f32 %v187, %v188
    %v190 = vsel %vm98, %v75, 0.0
    %v191 = vadd.f32 %v189, %v190
    %v192 = vsel %vm98, %v76, 0.0
    %v193 = vadd.f32 %v191, %v192
    %v194 = vsel %vm98, %v77, 0.0
    %v195 = vadd.f32 %v193, %v194
    %v196 = vsel %vm98, %v78, 0.0
    %v197 = vadd.f32 %v195, %v196
    %v198 = vsel %vm98, %v79, 0.0
    %v199 = vadd.f32 %v197, %v198
    %v200 = vsel %vm98, %v80, 0.0
    %v201 = vadd.f32 %v199, %v200
    %v202 = vsel %vm98, %v81, 0.0
    %v203 = vadd.f32 %v201, %v202
    %v204 = vrot.slane %v203, 4
    %v205 = vadd.f32 %v203, %v204
    %v206 = vrot.slane %v205, 2
    %v207 = vadd.f32 %v205, %v206
    %v208 = vrot.slane %v207, 1
    %v209 = vadd.f32 %v207, %v208
    %v210 = vsel %vm98, %v82, 0.0
    %v211 = vsel %vm98, %v83, 0.0
    %v212 = vadd.f32 %v210, %v211
    %v213 = vsel %vm98, %v84, 0.0
    %v214 = vadd.f32 %v212, %v213
    %v215 = vsel %vm98, %v85, 0.0
    %v216 = vadd.f32 %v214, %v215
    %v217 = vsel %vm98, %v86, 0.0
    %v218 = vadd.f32 %v216, %v217
    %v219 = vsel %vm98, %v87, 0.0
    %v220 = vadd.f32 %v218, %v219
    %v221 = vsel %vm98, %v88, 0.0
    %v222 = vadd.f32 %v220, %v221
    %v223 = vsel %vm98, %v89, 0.0
    %v224 = vadd.f32 %v222, %v223
    %v225 = vsel %vm98, %v90, 0.0
    %v226 = vadd.f32 %v224, %v225
    %v227 = vsel %vm98, %v91, 0.0
    %v228 = vadd.f32 %v226, %v227
    %v229 = vsel %vm98, %v92, 0.0
    %v230 = vadd.f32 %v228, %v229
    %v231 = vsel %vm98, %v93, 0.0
    %v232 = vadd.f32 %v230, %v231
    %v233 = vsel %vm98, %v94, 0.0
    %v234 = vadd.f32 %v232, %v233
    %v235 = vsel %vm98, %v95, 0.0
    %v236 = vadd.f32 %v234, %v235
    %v237 = vsel %vm98, %v96, 0.0
    %v238 = vadd.f32 %v236, %v237
    %v239 = vsel %vm98, %v97, 0.0
    %v240 = vadd.f32 %v238, %v239
    %v241 = vrot.slane %v240, 4
    %v242 = vadd.f32 %v240, %v241
    %v243 = vrot.slane %v242, 2
    %v244 = vadd.f32 %v242, %v243
    %v245 = vrot.slane %v244, 1
    %v246 = vadd.f32 %v244, %v245
    %v247 = vrcp.pop 128.0
    %v248 = vmul.f32 128.0, %v247
    %v249 = vsub.f32 1.0, %v248
    %v250 = vmul.f32 %v247, %v249
    %v251 = vadd.f32 %v247, %v250
    %vm252 = vweird.f32 %v247
    %v253 = vsel %vm252, %v247, %v251
    %v254 = vmul.f32 %v135, %v253
    %v255 = vmul.f32 %v172, %v253
    %v256 = vmul.f32 %v209, %v253
    %v257 = vmul.f32 %v246, %v253
    %v258 = vsel %vm98, %v34, -inf
    %v259 = vsel %vm98, %v35, -inf
    %v260 = vmax.f32 %v258, %v259
    %v261 = vsel %vm98, %v36, -inf
    %v262 = vmax.f32 %v260, %v261
    %v263 = vsel %vm98, %v37, -inf
    %v264 = vmax.f32 %v262, %v263
    %v265 = vsel %vm98, %v38, -inf
    %v266 = vmax.f32 %v264, %v265
    %v267 = vsel %vm98, %v39, -inf
    %v268 = vmax.f32 %v266, %v267
    %v269 = vsel %vm98, %v40, -inf
    %v270 = vmax.f32 %v268, %v269
    %v271 = vsel %vm98, %v41, -inf
    %v272 = vmax.f32 %v270, %v271
    %v273 = vsel %vm98, %v42, -inf
    %v274 = vmax.f32 %v272, %v273
    %v275 = vsel %vm98, %v43, -inf
    %v276 = vmax.f32 %v274, %v275
    %v277 = vsel %vm98, %v44, -inf
    %v278 = vmax.f32 %v276, %v277
    %v279 = vsel %vm98, %v45, -inf
    %v280 = vmax.f32 %v278, %v279
    %v281 = vsel %vm98, %v46, -inf
    %v282 = vmax.f32 %v280, %v281
    %v283 = vsel %vm98, %v47, -inf
    %v284 = vmax.f32 %v282, %v283
    %v285 = vsel %vm98, %v48, -inf
    %v286 = vmax.f32 %v284, %v285
    %v287 = vsel %vm98, %v49, -inf
    %v288 = vmax.f32 %v286, %v287
    %v289 = vrot.slane %v288, 4
    %v290 = vmax.f32 %v288, %v289
    %v291 = vrot.slane %v290, 2
    %v292 = vmax.f32 %v290, %v291
    %v293 = vrot.slane %v292, 1
    %v294 = vmax.f32 %v292, %v293
    %v295 = vsel %vm98, %v50, -inf
    %v296 = vsel %vm98, %v51, -inf
    %v297 = vmax.f32 %v295, %v296
    %v298 = vsel %vm98, %v52, -inf
    %v299 = vmax.f32 %v297, %v298
    %v300 = vsel %vm98, %v53, -inf
    %v301 = vmax.f32 %v299, %v300
    %v302 = vsel %vm98, %v54, -inf
    %v303 = vmax.f32 %v301, %v302
    %v304 = vsel %vm98, %v55, -inf
    %v305 = vmax.f32 %v303, %v304
    %v306 = vsel %vm98, %v56, -inf
    %v307 = vmax.f32 %v305, %v306
    %v308 = vsel %vm98, %v57, -inf
    %v309 = vmax.f32 %v307, %v308
    %v310 = vsel %vm98, %v58, -inf
    %v311 = vmax.f32 %v309, %v310
    %v312 = vsel %vm98, %v59, -inf
    %v313 = vmax.f32 %v311, %v312
    %v314 = vsel %vm98, %v60, -inf
    %v315 = vmax.f32 %v313, %v314
    %v316 = vsel %vm98, %v61, -inf
    %v317 = vmax.f32 %v315, %v316
    %v318 = vsel %vm98, %v62, -inf
    %v319 = vmax.f32 %v317, %v318
    %v320 = vsel %vm98, %v63, -inf
    %v321 = vmax.f32 %v319, %v320
    %v322 = vsel %vm98, %v64, -inf
    %v323 = vmax.f32 %v321, %v322
    %v324 = vsel %vm98, %v65, -inf
    %v325 = vmax.f32 %v323, %v324
    %v326 = vrot.slane %v325, 4
    %v327 = vmax.f32 %v325, %v326
    %v328 = vrot.slane %v327, 2
    %v329 = vmax.f32 %v327, %v328
    %v330 = vrot.slane %v329, 1
    %v331 = vmax.f32 %v329, %v330
    %v332 = vsel %vm98, %v66, -inf
    %v333 = vsel %vm98, %v67, -inf
    %v334 = vmax.f32 %v332, %v333
    %v335 = vsel %vm98, %v68, -inf
    %v336 = vmax.f32 %v334, %v335
    %v337 = vsel %vm98, %v69, -inf
    %v338 = vmax.f32 %v336, %v337
    %v339 = vsel %vm98, %v70, -inf
    %v340 = vmax.f32 %v338, %v339
    %v341 = vsel %vm98, %v71, -inf
    %v342 = vmax.f32 %v340, %v341
    %v343 = vsel %vm98, %v72, -inf
    %v344 = vmax.f32 %v342, %v343
    %v345 = vsel %vm98, %v73, -inf
    %v346 = vmax.f32 %v344, %v345
    %v347 = vsel %vm98, %v74, -inf
    %v348 = vmax.f32 %v346, %v347
    %v349 = vsel %vm98, %v75, -inf
    %v350 = vmax.f32 %v348, %v349
    %v351 = vsel %vm98, %v76, -inf
    %v352 = vmax.f32 %v350, %v351
    %v353 = vsel %vm98, %v77, -inf
    %v354 = vmax.f32 %v352, %v353
    %v355 = vsel %vm98, %v78, -inf
    %v356 = vmax.f32 %v354, %v355
    %v357 = vsel %vm98, %v79, -inf
    %v358 = vmax.f32 %v356, %v357
    %v359 = vsel %vm98, %v80, -inf
    %v360 = vmax.f32 %v358, %v359
    %v361 = vsel %vm98, %v81, -inf
    %v362 = vmax.f32 %v360, %v361
    %v363 = vrot.slane %v362, 4
    %v364 = vmax.f32 %v362, %v363
    %v365 = vrot.slane %v364, 2
    %v366 = vmax.f32 %v364, %v365
    %v367 = vrot.slane %v366, 1
    %v368 = vmax.f32 %v366, %v367
    %v369 = vsel %vm98, %v82, -inf
    %v370 = vsel %vm98, %v83, -inf
    %v371 = vmax.f32 %v369, %v370
    %v372 = vsel %vm98, %v84, -inf
    %v373 = vmax.f32 %v371, %v372
    %v374 = vsel %vm98, %v85, -inf
    %v375 = vmax.f32 %v373, %v374
    %v376 = vsel %vm98, %v86, -inf
    %v377 = vmax.f32 %v375, %v376
    %v378 = vsel %vm98, %v87, -inf
    %v379 = vmax.f32 %v377, %v378
    %v380 = vsel %vm98, %v88, -inf
    %v381 = vmax.f32 %v379, %v380
    %v382 = vsel %vm98, %v89, -inf
    %v383 = vmax.f32 %v381, %v382
    %v384 = vsel %vm98, %v90, -inf
    %v385 = vmax.f32 %v383, %v384
    %v386 = vsel %vm98, %v91, -inf
    %v387 = vmax.f32 %v385, %v386
    %v388 = vsel %vm98, %v92, -inf
    %v389 = vmax.f32 %v387, %v388
    %v390 = vsel %vm98, %v93, -inf
    %v391 = vmax.f32 %v389, %v390
    %v392 = vsel %vm98, %v94, -inf
    %v393 = vmax.f32 %v391, %v392
    %v394 = vsel %vm98, %v95, -inf
    %v395 = vmax.f32 %v393, %v394
    %v396 = vsel %vm98, %v96, -inf
    %v397 = vmax.f32 %v395, %v396
    %v398 = vsel %vm98, %v97, -inf
    %v399 = vmax.f32 %v397, %v398
    %v400 = vrot.slane %v399, 4
    %v401 = vmax.f32 %v399, %v400
    %v402 = vrot.slane %v401, 2
    %v403 = vmax.f32 %v401, %v402
    %v404 = vrot.slane %v403, 1
    %v405 = vmax.f32 %v403, %v404
    %s406 = sld [smem:[#allocation2]]
    %s407 = sld [smem:[#allocation2 + $0x1]]
    %v408 = vstv %s406
    %v409 = vmul.f32 %v408, %v254
    %v410 = vmul.f32 %v408, %v255
    %v411 = vmul.f32 %v408, %v256
    %v412 = vmul.f32 %v408, %v257
    %v413 = vstv %s407
    %v414 = vmul.f32 %v413, %v294
    %v415 = vmul.f32 %v413, %v331
    %v416 = vmul.f32 %v413, %v368
    %v417 = vmul.f32 %v413, %v405
    %v418 = vadd.f32 %v409, %v414
    %v419 = vadd.f32 %v410, %v415
    %v420 = vadd.f32 %v411, %v416
    %v421 = vadd.f32 %v412, %v417
    %v422 = vxor.u32 %v418, 2147483648
    %v423 = vxor.u32 %v419, 2147483648
    %v424 = vxor.u32 %v420, 2147483648
    %v425 = vxor.u32 %v421, 2147483648
    %v426 = vmul.f32 %v422, 1.442695
    %v427 = vpow.pop %v426
    %v428 = vmul.f32 %v423, 1.442695
    %v429 = vpow.pop %v428
    %v430 = vmul.f32 %v424, 1.442695
    %v431 = vpow.pop %v430
    %v432 = vmul.f32 %v425, 1.442695
    %v433 = vpow.pop %v432
    %v434 = vadd.f32 %v427, 1.0
    %v435 = vadd.f32 %v429, 1.0
    %v436 = vadd.f32 %v431, 1.0
    %v437 = vadd.f32 %v433, 1.0
    %v438 = vrcp.pop %v434
    %v439 = vmul.f32 %v434, %v438
    %v440 = vsub.f32 1.0, %v439
    %v441 = vmul.f32 %v438, %v440
    %v442 = vadd.f32 %v438, %v441
    %vm443 = vweird.f32 %v434
    %vm444 = vweird.f32 %v438
    %vm445 = vmor %vm443, %vm444
    %v446 = vsel %vm445, %v438, %v442
    %v447 = vand.u32 2147483647, %v434
    %vm448 = vcmp.eq.f32.partialorder %v447, 8.507059e+37
    %v449 = vand.u32 %v434, 2147483648
    %v450 = vor.u32 1.1754944e-38, %v449
    %v451 = vsel %vm448, %v450, %v446
    %v452 = vmul.f32 1.0, %v451
    %v453 = vrcp.pop %v435
    %v454 = vmul.f32 %v435, %v453
    %v455 = vsub.f32 1.0, %v454
    %v456 = vmul.f32 %v453, %v455
    %v457 = vadd.f32 %v453, %v456
    %vm458 = vweird.f32 %v435
    %vm459 = vweird.f32 %v453
    %vm460 = vmor %vm458, %vm459
    %v461 = vsel %vm460, %v453, %v457
    %v462 = vand.u32 2147483647, %v435
    %vm463 = vcmp.eq.f32.partialorder %v462, 8.507059e+37
    %v464 = vand.u32 %v435, 2147483648
    %v465 = vor.u32 1.1754944e-38, %v464
    %v466 = vsel %vm463, %v465, %v461
    %v467 = vmul.f32 1.0, %v466
    %v468 = vrcp.pop %v436
    %v469 = vmul.f32 %v436, %v468
    %v470 = vsub.f32 1.0, %v469
    %v471 = vmul.f32 %v468, %v470
    %v472 = vadd.f32 %v468, %v471
    %vm473 = vweird.f32 %v436
    %vm474 = vweird.f32 %v468
    %vm475 = vmor %vm473, %vm474
    %v476 = vsel %vm475, %v468, %v472
    %v477 = vand.u32 2147483647, %v436
    %vm478 = vcmp.eq.f32.partialorder %v477, 8.507059e+37
    %v479 = vand.u32 %v436, 2147483648
    %v480 = vor.u32 1.1754944e-38, %v479
    %v481 = vsel %vm478, %v480, %v476
    %v482 = vmul.f32 1.0, %v481
    %v483 = vrcp.pop %v437
    %v484 = vmul.f32 %v437, %v483
    %v485 = vsub.f32 1.0, %v484
    %v486 = vmul.f32 %v483, %v485
    %v487 = vadd.f32 %v483, %v486
    %vm488 = vweird.f32 %v437
    %vm489 = vweird.f32 %v483
    %vm490 = vmor %vm488, %vm489
    %v491 = vsel %vm490, %v483, %v487
    %v492 = vand.u32 2147483647, %v437
    %vm493 = vcmp.eq.f32.partialorder %v492, 8.507059e+37
    %v494 = vand.u32 %v437, 2147483648
    %v495 = vor.u32 1.1754944e-38, %v494
    %v496 = vsel %vm493, %v495, %v491
    %v497 = vmul.f32 1.0, %v496
    %v498 = vadd.f32 %v452, 1.0
    %v499 = vadd.f32 %v467, 1.0
    %v500 = vadd.f32 %v482, 1.0
    %v501 = vadd.f32 %v497, 1.0
    %v502 = vmul.f32 %v498, %v34
    %v503 = vmul.f32 %v498, %v35
    %v504 = vmul.f32 %v498, %v36
    %v505 = vmul.f32 %v498, %v37
    %v506 = vmul.f32 %v498, %v38
    %v507 = vmul.f32 %v498, %v39
    %v508 = vmul.f32 %v498, %v40
    %v509 = vmul.f32 %v498, %v41
    %v510 = vmul.f32 %v498, %v42
    %v511 = vmul.f32 %v498, %v43
    %v512 = vmul.f32 %v498, %v44
    %v513 = vmul.f32 %v498, %v45
    %v514 = vmul.f32 %v498, %v46
    %v515 = vmul.f32 %v498, %v47
    %v516 = vmul.f32 %v498, %v48
    %v517 = vmul.f32 %v498, %v49
    %v518 = vmul.f32 %v499, %v50
    %v519 = vmul.f32 %v499, %v51
    %v520 = vmul.f32 %v499, %v52
    %v521 = vmul.f32 %v499, %v53
    %v522 = vmul.f32 %v499, %v54
    %v523 = vmul.f32 %v499, %v55
    %v524 = vmul.f32 %v499, %v56
    %v525 = vmul.f32 %v499, %v57
    %v526 = vmul.f32 %v499, %v58
    %v527 = vmul.f32 %v499, %v59
    %v528 = vmul.f32 %v499, %v60
    %v529 = vmul.f32 %v499, %v61
    %v530 = vmul.f32 %v499, %v62
    %v531 = vmul.f32 %v499, %v63
    %v532 = vmul.f32 %v499, %v64
    %v533 = vmul.f32 %v499, %v65
    %v534 = vmul.f32 %v500, %v66
    %v535 = vmul.f32 %v500, %v67
    %v536 = vmul.f32 %v500, %v68
    %v537 = vmul.f32 %v500, %v69
    %v538 = vmul.f32 %v500, %v70
    %v539 = vmul.f32 %v500, %v71
    %v540 = vmul.f32 %v500, %v72
    %v541 = vmul.f32 %v500, %v73
    %v542 = vmul.f32 %v500, %v74
    %v543 = vmul.f32 %v500, %v75
    %v544 = vmul.f32 %v500, %v76
    %v545 = vmul.f32 %v500, %v77
    %v546 = vmul.f32 %v500, %v78
    %v547 = vmul.f32 %v500, %v79
    %v548 = vmul.f32 %v500, %v80
    %v549 = vmul.f32 %v500, %v81
    %v550 = vmul.f32 %v501, %v82
    %v551 = vmul.f32 %v501, %v83
    %v552 = vmul.f32 %v501, %v84
    %v553 = vmul.f32 %v501, %v85
    %v554 = vmul.f32 %v501, %v86
    %v555 = vmul.f32 %v501, %v87
    %v556 = vmul.f32 %v501, %v88
    %v557 = vmul.f32 %v501, %v89
    %v558 = vmul.f32 %v501, %v90
    %v559 = vmul.f32 %v501, %v91
    %v560 = vmul.f32 %v501, %v92
    %v561 = vmul.f32 %v501, %v93
    %v562 = vmul.f32 %v501, %v94
    %v563 = vmul.f32 %v501, %v95
    %v564 = vmul.f32 %v501, %v96
    %v565 = vmul.f32 %v501, %v97
    %v566 = vsel %vm98, %v502, 0.0
    %567 = vadd.xlane.f32.xlu0 %v566
    %v568 = vpop.xlane.xlu0 %567
    %v569 = vsel %vm98, %v503, 0.0
    %570 = vadd.xlane.f32.xlu0 %v569
    %v571 = vpop.xlane.xlu0 %570
    %v572 = vsel %vm98, %v504, 0.0
    %573 = vadd.xlane.f32.xlu0 %v572
    %v574 = vpop.xlane.xlu0 %573
    %v575 = vsel %vm98, %v505, 0.0
    %576 = vadd.xlane.f32.xlu0 %v575
    %v577 = vpop.xlane.xlu0 %576
    %v578 = vsel %vm98, %v506, 0.0
    %579 = vadd.xlane.f32.xlu0 %v578
    %v580 = vpop.xlane.xlu0 %579
    %v581 = vsel %vm98, %v507, 0.0
    %582 = vadd.xlane.f32.xlu0 %v581
    %v583 = vpop.xlane.xlu0 %582
    %v584 = vsel %vm98, %v508, 0.0
    %585 = vadd.xlane.f32.xlu0 %v584
    %v586 = vpop.xlane.xlu0 %585
    %v587 = vsel %vm98, %v509, 0.0
    %588 = vadd.xlane.f32.xlu0 %v587
    %v589 = vpop.xlane.xlu0 %588
    %v590 = vsel %vm98, %v510, 0.0
    %591 = vadd.xlane.f32.xlu0 %v590
    %v592 = vpop.xlane.xlu0 %591
    %v593 = vsel %vm98, %v511, 0.0
    %594 = vadd.xlane.f32.xlu0 %v593
    %v595 = vpop.xlane.xlu0 %594
    %v596 = vsel %vm98, %v512, 0.0
    %597 = vadd.xlane.f32.xlu0 %v596
    %v598 = vpop.xlane.xlu0 %597
    %v599 = vsel %vm98, %v513, 0.0
    %600 = vadd.xlane.f32.xlu0 %v599
    %v601 = vpop.xlane.xlu0 %600
    %v602 = vsel %vm98, %v514, 0.0
    %603 = vadd.xlane.f32.xlu0 %v602
    %v604 = vpop.xlane.xlu0 %603
    %v605 = vsel %vm98, %v515, 0.0
    %606 = vadd.xlane.f32.xlu0 %v605
    %v607 = vpop.xlane.xlu0 %606
    %v608 = vsel %vm98, %v516, 0.0
    %609 = vadd.xlane.f32.xlu0 %v608
    %v610 = vpop.xlane.xlu0 %609
    %v611 = vsel %vm98, %v517, 0.0
    %612 = vadd.xlane.f32.xlu0 %v611
    %v613 = vpop.xlane.xlu0 %612
    %v614 = vsel %vm98, %v518, 0.0
    %615 = vadd.xlane.f32.xlu0 %v614
    %v616 = vpop.xlane.xlu0 %615
    %v617 = vsel %vm98, %v519, 0.0
    %618 = vadd.xlane.f32.xlu0 %v617
    %v619 = vpop.xlane.xlu0 %618
    %v620 = vsel %vm98, %v520, 0.0
    %621 = vadd.xlane.f32.xlu0 %v620
    %v622 = vpop.xlane.xlu0 %621
    %v623 = vsel %vm98, %v521, 0.0
    %624 = vadd.xlane.f32.xlu0 %v623
    %v625 = vpop.xlane.xlu0 %624
    %v626 = vsel %vm98, %v522, 0.0
    %627 = vadd.xlane.f32.xlu0 %v626
    %v628 = vpop.xlane.xlu0 %627
    %v629 = vsel %vm98, %v523, 0.0
    %630 = vadd.xlane.f32.xlu0 %v629
    %v631 = vpop.xlane.xlu0 %630
    %v632 = vsel %vm98, %v524, 0.0
    %633 = vadd.xlane.f32.xlu0 %v632
    %v634 = vpop.xlane.xlu0 %633
    %v635 = vsel %vm98, %v525, 0.0
    %636 = vadd.xlane.f32.xlu0 %v635
    %v637 = vpop.xlane.xlu0 %636
    %v638 = vsel %vm98, %v526, 0.0
    %639 = vadd.xlane.f32.xlu0 %v638
    %v640 = vpop.xlane.xlu0 %639
    %v641 = vsel %vm98, %v527, 0.0
    %642 = vadd.xlane.f32.xlu0 %v641
    %v643 = vpop.xlane.xlu0 %642
    %v644 = vsel %vm98, %v528, 0.0
    %645 = vadd.xlane.f32.xlu0 %v644
    %v646 = vpop.xlane.xlu0 %645
    %v647 = vsel %vm98, %v529, 0.0
    %648 = vadd.xlane.f32.xlu0 %v647
    %v649 = vpop.xlane.xlu0 %648
    %v650 = vsel %vm98, %v530, 0.0
    %651 = vadd.xlane.f32.xlu0 %v650
    %v652 = vpop.xlane.xlu0 %651
    %v653 = vsel %vm98, %v531, 0.0
    %654 = vadd.xlane.f32.xlu0 %v653
    %v655 = vpop.xlane.xlu0 %654
    %v656 = vsel %vm98, %v532, 0.0
    %657 = vadd.xlane.f32.xlu0 %v656
    %v658 = vpop.xlane.xlu0 %657
    %v659 = vsel %vm98, %v533, 0.0
    %660 = vadd.xlane.f32.xlu0 %v659
    %v661 = vpop.xlane.xlu0 %660
    %v662 = vsel %vm98, %v534, 0.0
    %663 = vadd.xlane.f32.xlu0 %v662
    %v664 = vpop.xlane.xlu0 %663
    %v665 = vsel %vm98, %v535, 0.0
    %666 = vadd.xlane.f32.xlu0 %v665
    %v667 = vpop.xlane.xlu0 %666
    %v668 = vsel %vm98, %v536, 0.0
    %669 = vadd.xlane.f32.xlu0 %v668
    %v670 = vpop.xlane.xlu0 %669
    %v671 = vsel %vm98, %v537, 0.0
    %672 = vadd.xlane.f32.xlu0 %v671
    %v673 = vpop.xlane.xlu0 %672
    %v674 = vsel %vm98, %v538, 0.0
    %675 = vadd.xlane.f32.xlu0 %v674
    %v676 = vpop.xlane.xlu0 %675
    %v677 = vsel %vm98, %v539, 0.0
    %678 = vadd.xlane.f32.xlu0 %v677
    %v679 = vpop.xlane.xlu0 %678
    %v680 = vsel %vm98, %v540, 0.0
    %681 = vadd.xlane.f32.xlu0 %v680
    %v682 = vpop.xlane.xlu0 %681
    %v683 = vsel %vm98, %v541, 0.0
    %684 = vadd.xlane.f32.xlu0 %v683
    %v685 = vpop.xlane.xlu0 %684
    %v686 = vsel %vm98, %v542, 0.0
    %687 = vadd.xlane.f32.xlu0 %v686
    %v688 = vpop.xlane.xlu0 %687
    %v689 = vsel %vm98, %v543, 0.0
    %690 = vadd.xlane.f32.xlu0 %v689
    %v691 = vpop.xlane.xlu0 %690
    %v692 = vsel %vm98, %v544, 0.0
    %693 = vadd.xlane.f32.xlu0 %v692
    %v694 = vpop.xlane.xlu0 %693
    %v695 = vsel %vm98, %v545, 0.0
    %696 = vadd.xlane.f32.xlu0 %v695
    %v697 = vpop.xlane.xlu0 %696
    %v698 = vsel %vm98, %v546, 0.0
    %699 = vadd.xlane.f32.xlu0 %v698
    %v700 = vpop.xlane.xlu0 %699
    %v701 = vsel %vm98, %v547, 0.0
    %702 = vadd.xlane.f32.xlu0 %v701
    %v703 = vpop.xlane.xlu0 %702
    %v704 = vsel %vm98, %v548, 0.0
    %705 = vadd.xlane.f32.xlu0 %v704
    %v706 = vpop.xlane.xlu0 %705
    %v707 = vsel %vm98, %v549, 0.0
    %708 = vadd.xlane.f32.xlu0 %v707
    %v709 = vpop.xlane.xlu0 %708
    %v710 = vsel %vm98, %v550, 0.0
    %711 = vadd.xlane.f32.xlu0 %v710
    %v712 = vpop.xlane.xlu0 %711
    %v713 = vsel %vm98, %v551, 0.0
    %714 = vadd.xlane.f32.xlu0 %v713
    %v715 = vpop.xlane.xlu0 %714
    %v716 = vsel %vm98, %v552, 0.0
    %717 = vadd.xlane.f32.xlu0 %v716
    %v718 = vpop.xlane.xlu0 %717
    %v719 = vsel %vm98, %v553, 0.0
    %720 = vadd.xlane.f32.xlu0 %v719
    %v721 = vpop.xlane.xlu0 %720
    %v722 = vsel %vm98, %v554, 0.0
    %723 = vadd.xlane.f32.xlu0 %v722
    %v724 = vpop.xlane.xlu0 %723
    %v725 = vsel %vm98, %v555, 0.0
    %726 = vadd.xlane.f32.xlu0 %v725
    %v727 = vpop.xlane.xlu0 %726
    %v728 = vsel %vm98, %v556, 0.0
    %729 = vadd.xlane.f32.xlu0 %v728
    %v730 = vpop.xlane.xlu0 %729
    %v731 = vsel %vm98, %v557, 0.0
    %732 = vadd.xlane.f32.xlu0 %v731
    %v733 = vpop.xlane.xlu0 %732
    %v734 = vsel %vm98, %v558, 0.0
    %735 = vadd.xlane.f32.xlu0 %v734
    %v736 = vpop.xlane.xlu0 %735
    %v737 = vsel %vm98, %v559, 0.0
    %738 = vadd.xlane.f32.xlu0 %v737
    %v739 = vpop.xlane.xlu0 %738
    %v740 = vsel %vm98, %v560, 0.0
    %741 = vadd.xlane.f32.xlu0 %v740
    %v742 = vpop.xlane.xlu0 %741
    %v743 = vsel %vm98, %v561, 0.0
    %744 = vadd.xlane.f32.xlu0 %v743
    %v745 = vpop.xlane.xlu0 %744
    %v746 = vsel %vm98, %v562, 0.0
    %747 = vadd.xlane.f32.xlu0 %v746
    %v748 = vpop.xlane.xlu0 %747
    %v749 = vsel %vm98, %v563, 0.0
    %750 = vadd.xlane.f32.xlu0 %v749
    %v751 = vpop.xlane.xlu0 %750
    %v752 = vsel %vm98, %v564, 0.0
    %753 = vadd.xlane.f32.xlu0 %v752
    %v754 = vpop.xlane.xlu0 %753
    %v755 = vsel %vm98, %v565, 0.0
    %756 = vadd.xlane.f32.xlu0 %v755
    %v757 = vpop.xlane.xlu0 %756
    %v758 = vmul.f32 %v568, 0.0078125
    %v759 = vmul.f32 %v571, 0.0078125
    %v760 = vmul.f32 %v574, 0.0078125
    %v761 = vmul.f32 %v577, 0.0078125
    %v762 = vmul.f32 %v580, 0.0078125
    %v763 = vmul.f32 %v583, 0.0078125
    %v764 = vmul.f32 %v586, 0.0078125
    %v765 = vmul.f32 %v589, 0.0078125
    %v766 = vmul.f32 %v592, 0.0078125
    %v767 = vmul.f32 %v595, 0.0078125
    %v768 = vmul.f32 %v598, 0.0078125
    %v769 = vmul.f32 %v601, 0.0078125
    %v770 = vmul.f32 %v604, 0.0078125
    %v771 = vmul.f32 %v607, 0.0078125
    %v772 = vmul.f32 %v610, 0.0078125
    %v773 = vmul.f32 %v613, 0.0078125
    %v774 = vmul.f32 %v616, 0.0078125
    %v775 = vmul.f32 %v619, 0.0078125
    %v776 = vmul.f32 %v622, 0.0078125
    %v777 = vmul.f32 %v625, 0.0078125
    %v778 = vmul.f32 %v628, 0.0078125
    %v779 = vmul.f32 %v631, 0.0078125
    %v780 = vmul.f32 %v634, 0.0078125
    %v781 = vmul.f32 %v637, 0.0078125
    %v782 = vmul.f32 %v640, 0.0078125
    %v783 = vmul.f32 %v643, 0.0078125
    %v784 = vmul.f32 %v646, 0.0078125
    %v785 = vmul.f32 %v649, 0.0078125
    %v786 = vmul.f32 %v652, 0.0078125
    %v787 = vmul.f32 %v655, 0.0078125
    %v788 = vmul.f32 %v658, 0.0078125
    %v789 = vmul.f32 %v661, 0.0078125
    %v790 = vmul.f32 %v664, 0.0078125
    %v791 = vmul.f32 %v667, 0.0078125
    %v792 = vmul.f32 %v670, 0.0078125
    %v793 = vmul.f32 %v673, 0.0078125
    %v794 = vmul.f32 %v676, 0.0078125
    %v795 = vmul.f32 %v679, 0.0078125
    %v796 = vmul.f32 %v682, 0.0078125
    %v797 = vmul.f32 %v685, 0.0078125
    %v798 = vmul.f32 %v688, 0.0078125
    %v799 = vmul.f32 %v691, 0.0078125
    %v800 = vmul.f32 %v694, 0.0078125
    %v801 = vmul.f32 %v697, 0.0078125
    %v802 = vmul.f32 %v700, 0.0078125
    %v803 = vmul.f32 %v703, 0.0078125
    %v804 = vmul.f32 %v706, 0.0078125
    %v805 = vmul.f32 %v709, 0.0078125
    %v806 = vmul.f32 %v712, 0.0078125
    %v807 = vmul.f32 %v715, 0.0078125
    %v808 = vmul.f32 %v718, 0.0078125
    %v809 = vmul.f32 %v721, 0.0078125
    %v810 = vmul.f32 %v724, 0.0078125
    %v811 = vmul.f32 %v727, 0.0078125
    %v812 = vmul.f32 %v730, 0.0078125
    %v813 = vmul.f32 %v733, 0.0078125
    %v814 = vmul.f32 %v736, 0.0078125
    %v815 = vmul.f32 %v739, 0.0078125
    %v816 = vmul.f32 %v742, 0.0078125
    %v817 = vmul.f32 %v745, 0.0078125
    %v818 = vmul.f32 %v748, 0.0078125
    %v819 = vmul.f32 %v751, 0.0078125
    %v820 = vmul.f32 %v754, 0.0078125
    %v821 = vmul.f32 %v757, 0.0078125
    %v886 = vlaneseq
    %v887 = vand.u32 %v886, 127
    %v888 = vperm.slane %v758, %v887
    %v889 = vadd.s32 %v887, 4294967288
    %v890 = vperm.slane %v759, %v889
    %vm891 = vcmask 130112
    %v892 = vsel %vm891, %v890, %v888
    %v893 = vadd.s32 %v887, 4294967280
    %v894 = vperm.slane %v760, %v893
    %vm895 = vcmask 195712
    %v896 = vsel %vm895, %v894, %v892
    %v897 = vadd.s32 %v887, 4294967272
    %v898 = vperm.slane %v761, %v897
    %vm899 = vcmask 261312
    %v900 = vsel %vm899, %v898, %v896
    %v901 = vadd.s32 %v887, 4294967264
    %v902 = vperm.slane %v762, %v901
    %vm903 = vcmask 326912
    %v904 = vsel %vm903, %v902, %v900
    %v905 = vadd.s32 %v887, 4294967256
    %v906 = vperm.slane %v763, %v905
    %vm907 = vcmask 392512
    %v908 = vsel %vm907, %v906, %v904
    %v909 = vadd.s32 %v887, 4294967248
    %v910 = vperm.slane %v764, %v909
    %vm911 = vcmask 458112
    %v912 = vsel %vm911, %v910, %v908
    %v913 = vadd.s32 %v887, 4294967240
    %v914 = vperm.slane %v765, %v913
    %vm915 = vcmask 523712
    %v916 = vsel %vm915, %v914, %v912
    %v917 = vadd.s32 %v887, 4294967232
    %v918 = vperm.slane %v766, %v917
    %vm919 = vcmask 589312
    %v920 = vsel %vm919, %v918, %v916
    %v921 = vadd.s32 %v887, 4294967224
    %v922 = vperm.slane %v767, %v921
    %vm923 = vcmask 654912
    %v924 = vsel %vm923, %v922, %v920
    %v925 = vadd.s32 %v887, 4294967216
    %v926 = vperm.slane %v768, %v925
    %vm927 = vcmask 720512
    %v928 = vsel %vm927, %v926, %v924
    %v929 = vadd.s32 %v887, 4294967208
    %v930 = vperm.slane %v769, %v929
    %vm931 = vcmask 786112
    %v932 = vsel %vm931, %v930, %v928
    %v933 = vadd.s32 %v887, 4294967200
    %v934 = vperm.slane %v770, %v933
    %vm935 = vcmask 851712
    %v936 = vsel %vm935, %v934, %v932
    %v937 = vadd.s32 %v887, 4294967192
    %v938 = vperm.slane %v771, %v937
    %vm939 = vcmask 917312
    %v940 = vsel %vm939, %v938, %v936
    %v941 = vadd.s32 %v887, 4294967184
    %v942 = vperm.slane %v772, %v941
    %vm943 = vcmask 982912
    %v944 = vsel %vm943, %v942, %v940
    %v945 = vadd.s32 %v887, 4294967176
    %v946 = vperm.slane %v773, %v945
    %vm947 = vcmask 1048512
    %v948 = vsel %vm947, %v946, %v944
    %v949 = vperm.slane %v774, %v887
    %v950 = vperm.slane %v775, %v889
    %v951 = vsel %vm891, %v950, %v949
    %v952 = vperm.slane %v776, %v893
    %v953 = vsel %vm895, %v952, %v951
    %v954 = vperm.slane %v777, %v897
    %v955 = vsel %vm899, %v954, %v953
    %v956 = vperm.slane %v778, %v901
    %v957 = vsel %vm903, %v956, %v955
    %v958 = vperm.slane %v779, %v905
    %v959 = vsel %vm907, %v958, %v957
    %v960 = vperm.slane %v780, %v909
    %v961 = vsel %vm911, %v960, %v959
    %v962 = vperm.slane %v781, %v913
    %v963 = vsel %vm915, %v962, %v961
    %v964 = vperm.slane %v782, %v917
    %v965 = vsel %vm919, %v964, %v963
    %v966 = vperm.slane %v783, %v921
    %v967 = vsel %vm923, %v966, %v965
    %v968 = vperm.slane %v784, %v925
    %v969 = vsel %vm927, %v968, %v967
    %v970 = vperm.slane %v785, %v929
    %v971 = vsel %vm931, %v970, %v969
    %v972 = vperm.slane %v786, %v933
    %v973 = vsel %vm935, %v972, %v971
    %v974 = vperm.slane %v787, %v937
    %v975 = vsel %vm939, %v974, %v973
    %v976 = vperm.slane %v788, %v941
    %v977 = vsel %vm943, %v976, %v975
    %v978 = vperm.slane %v789, %v945
    %v979 = vsel %vm947, %v978, %v977
    %v980 = vperm.slane %v790, %v887
    %v981 = vperm.slane %v791, %v889
    %v982 = vsel %vm891, %v981, %v980
    %v983 = vperm.slane %v792, %v893
    %v984 = vsel %vm895, %v983, %v982
    %v985 = vperm.slane %v793, %v897
    %v986 = vsel %vm899, %v985, %v984
    %v987 = vperm.slane %v794, %v901
    %v988 = vsel %vm903, %v987, %v986
    %v989 = vperm.slane %v795, %v905
    %v990 = vsel %vm907, %v989, %v988
    %v991 = vperm.slane %v796, %v909
    %v992 = vsel %vm911, %v991, %v990
    %v993 = vperm.slane %v797, %v913
    %v994 = vsel %vm915, %v993, %v992
    %v995 = vperm.slane %v798, %v917
    %v996 = vsel %vm919, %v995, %v994
    %v997 = vperm.slane %v799, %v921
    %v998 = vsel %vm923, %v997, %v996
    %v999 = vperm.slane %v800, %v925
    %v1000 = vsel %vm927, %v999, %v998
    %v1001 = vperm.slane %v801, %v929
    %v1002 = vsel %vm931, %v1001, %v1000
    %v1003 = vperm.slane %v802, %v933
    %v1004 = vsel %vm935, %v1003, %v1002
    %v1005 = vperm.slane %v803, %v937
    %v1006 = vsel %vm939, %v1005, %v1004
    %v1007 = vperm.slane %v804, %v941
    %v1008 = vsel %vm943, %v1007, %v1006
    %v1009 = vperm.slane %v805, %v945
    %v1010 = vsel %vm947, %v1009, %v1008
    %v1011 = vperm.slane %v806, %v887
    %v1012 = vperm.slane %v807, %v889
    %v1013 = vsel %vm891, %v1012, %v1011
    %v1014 = vperm.slane %v808, %v893
    %v1015 = vsel %vm895, %v1014, %v1013
    %v1016 = vperm.slane %v809, %v897
    %v1017 = vsel %vm899, %v1016, %v1015
    %v1018 = vperm.slane %v810, %v901
    %v1019 = vsel %vm903, %v1018, %v1017
    %v1020 = vperm.slane %v811, %v905
    %v1021 = vsel %vm907, %v1020, %v1019
    %v1022 = vperm.slane %v812, %v909
    %v1023 = vsel %vm911, %v1022, %v1021
    %v1024 = vperm.slane %v813, %v913
    %v1025 = vsel %vm915, %v1024, %v1023
    %v1026 = vperm.slane %v814, %v917
    %v1027 = vsel %vm919, %v1026, %v1025
    %v1028 = vperm.slane %v815, %v921
    %v1029 = vsel %vm923, %v1028, %v1027
    %v1030 = vperm.slane %v816, %v925
    %v1031 = vsel %vm927, %v1030, %v1029
    %v1032 = vperm.slane %v817, %v929
    %v1033 = vsel %vm931, %v1032, %v1031
    %v1034 = vperm.slane %v818, %v933
    %v1035 = vsel %vm935, %v1034, %v1033
    %v1036 = vperm.slane %v819, %v937
    %v1037 = vsel %vm939, %v1036, %v1035
    %v1038 = vperm.slane %v820, %v941
    %v1039 = vsel %vm943, %v1038, %v1037
    %v1040 = vperm.slane %v821, %v945
    %v1041 = vsel %vm947, %v1040, %v1039
    %vm1042 = vcmask 1041409
    %v1043 = vsel %vm1042, %v979, %v948
    %vm1044 = vcmask 1042434
    %v1045 = vsel %vm1044, %v1010, %v1043
    %vm1046 = vcmask 1043459
    %v1047 = vsel %vm1046, %v1041, %v1045
    %1049 = vst [vmem:[#allocation6] sm:$0xf] %v1047
    %v1050 = vld [vmem:[%s2] sm:$0xff]
    %v1051 = vld [vmem:[%s2 + $0x8] sm:$0xff]
    %v1052 = vld [vmem:[%s2 + $0x10] sm:$0xff]
    %v1053 = vld [vmem:[%s2 + $0x18] sm:$0xff]
    %v1054 = vld [vmem:[%s2 + $0x20] sm:$0xff]
    %v1055 = vld [vmem:[%s2 + $0x28] sm:$0xff]
    %v1056 = vld [vmem:[%s2 + $0x30] sm:$0xff]
    %v1057 = vld [vmem:[%s2 + $0x38] sm:$0xff]
    %v1058 = vld [vmem:[%s2 + $0x40] sm:$0xff]
    %v1059 = vld [vmem:[%s2 + $0x48] sm:$0xff]
    %v1060 = vld [vmem:[%s2 + $0x50] sm:$0xff]
    %v1061 = vld [vmem:[%s2 + $0x58] sm:$0xff]
    %v1062 = vld [vmem:[%s2 + $0x60] sm:$0xff]
    %v1063 = vld [vmem:[%s2 + $0x68] sm:$0xff]
    %v1064 = vld [vmem:[%s2 + $0x70] sm:$0xff]
    %v1065 = vld [vmem:[%s2 + $0x78] sm:$0xff]
    %v1066 = vld [vmem:[%s3] sm:$0x1]
    %v1068 = vperm.slane %v1066, 0
    %1070 = vmatpush.msra.mxu0 %v1065
    %1071 = vmatpush.msra.mxu0 %v1064
    %1072 = vmatpush.msra.mxu0 %v1063
    %1073 = vmatpush.msra.mxu0 %v1062
    %1074 = vmatpush.msra.mxu0 %v1061
    %1075 = vmatpush.msra.mxu0 %v1060
    %1076 = vmatpush.msra.mxu0 %v1059
    %1077 = vmatpush.msra.mxu0 %v1058
    %1078 = vmatpush.msra.mxu0 %v1057
    %1079 = vmatpush.msra.mxu0 %v1056
    %1080 = vmatpush.msra.mxu0 %v1055
    %1081 = vmatpush.msra.mxu0 %v1054
    %1082 = vmatpush.msra.mxu0 %v1053
    %1083 = vmatpush.msra.mxu0 %v1052
    %1084 = vmatpush.msra.mxu0 %v1051
    %1085 = vmatpush.msra.mxu0 %v1050
    %1086 = vmatmul.f32.gmra.mxu0 %v1047
    %v1087 = vpop.f32.mrf.mxu0
    %v1088 = vadd.f32 %v1068, %v1087
    %1089 = vdwg.mxu0
    %1090 = vst [vmem:[#allocation5] sm:$0xf] %v1088
    // Predicated region
    $region22: #{tpu_custom_call.1} parent=1 // pred_check
      _
    $region23: #{tpu_custom_call.1} parent=1 // pred_check_branch
      %1092 = sbr.rel (0) target = $region25
    $region24: #{tpu_custom_call.1} parent=1 // pred_region
      %1094 = vsyncadd [#allocation3], 0
      %s1096 = sshll.u32 [#allocation5], 4
      %s1097 = int_to_ptr.vmem [resolvable:$true] %s1096
      %s1098 = sshll.u32 %s4, 4
      %s1099 = int_to_ptr.hbm [resolvable:$true] %s1098
      %1101 = dma.vmem_to_hbm [thread:$0]  %s1097, 64, %s1099, [#allocation3]
    $region25: #{tpu_custom_call.1} parent=1 // pred_fallthru
      _
    // Predicated region
    $region26: #{tpu_custom_call.1} parent=1 // pred_check
      _
    $region27: #{tpu_custom_call.1} parent=1 // pred_check_branch
      %1103 = sbr.rel (0) target = $region29
    $region28: #{tpu_custom_call.1} parent=1 // pred_region
      %1105 = vsyncadd [#allocation7], 0
      %s1107 = sshll.u32 [#allocation6], 4
      %s1108 = int_to_ptr.vmem [resolvable:$true] %s1107
      %s1109 = sshll.u32 %s5, 4
      %s1110 = int_to_ptr.hbm [resolvable:$true] %s1109
      %1112 = dma.vmem_to_hbm [thread:$0]  %s1108, 64, %s1110, [#allocation7]
    $region29: #{tpu_custom_call.1} parent=1 // pred_fallthru
      _
    // Predicated region
    $region30: #{tpu_custom_call.1} parent=1 // pred_check
      _
    $region31: #{tpu_custom_call.1} parent=1 // pred_check_branch
      %1114 = sbr.rel (0) target = $region33
    $region32: #{tpu_custom_call.1} parent=1 // pred_region
      %1116 = dma.done [#allocation3], 64
    $region33: #{tpu_custom_call.1} parent=1 // pred_fallthru
      _
    // Predicated region
    $region34: #{tpu_custom_call.1} parent=1 // pred_check
      _
    $region35: #{tpu_custom_call.1} parent=1 // pred_check_branch
      %1118 = sbr.rel (0) target = $region37
    $region36: #{tpu_custom_call.1} parent=1 // pred_region
      %1120 = dma.done [#allocation7], 64
    $region37: #{tpu_custom_call.1} parent=1 // pred_fallthru
      _
    %1121 = vsyncpa [#allocation3], 1
    %1122 = vsyncpa [#allocation7], 1
    %1123 = vsyncpa [#allocation4], 1

</llo_original>
